<compile_context>
chip_gen: v5e
topology: v5e:2x2
jax: 0.10.0
libtpu: 0.0.40
codegen_flags: <defaults>
</compile_context>

<pallas_src>
import jax
import jax.numpy as jnp
from jax.experimental import pallas as pl
from jax.experimental.pallas import tpu as pltpu

LANE = 128      # vreg lane width (fast axis)
SUBLANE = 8     # vreg sublane count

# Candidate slab lane widths (widest first). >128 lanes => longer unmasked
# stores and larger contiguous DMAs; 128 is the always-legal fallback.
_LANE_CANDIDATES = (4096, 2048, 1024, 512, 256, 128)

# ~2 MiB per pipeline buffer: 2x-in + 2x-out double buffering ~= 8 MiB VMEM,
# safe on every generation's default scoped VMEM (16/32/32 MiB) and inside
# the measured 1-4 MiB sweet spot (~85% of HBM roofline vs ~60% at 256 KiB).
_TARGET_TILE_BYTES = 2 * 1024 * 1024

# Keep >= 4 grid steps when there is enough work so the "parallel" batch axis
# can actually be sharded across both v7x TensorCores.
_MIN_GRID_STEPS = 4


def _logreg_kernel(x_ref, w_ref, b_ref, o_ref):
    # x_ref: [tile_r, lanes] lane-dense VMEM tile (auto double-buffered).
    # w_ref, b_ref: (1,) f32 scalars in SMEM (loop-invariant, scalar slot).
    w = w_ref[0]
    b = b_ref[0]
    x = x_ref[...].astype(jnp.float32)       # f32 math even for bf16 I/O (v5e has no bf16 VPU/EUP)
    z = x * w + b                            # Linear(1, 1): x @ W^T + b degenerates to an FMA
    o_ref[...] = jax.nn.sigmoid(z).astype(o_ref.dtype)   # exp -> EUP slot


def _round_up(a, m):
    return ((a + m - 1) // m) * m


def _choose_layout(n):
    """Pick (lanes, rows, pad) so the [n] stream becomes a lane-dense
    [rows, lanes] slab with ZERO copy whenever a candidate lane width divides n."""
    for lanes in _LANE_CANDIDATES:
        if n >= lanes and n % lanes == 0:
            return lanes, n // lanes, 0
    # Ragged n: minimal pad to the next multiple of 128 (NOT to a full tile
    # multiple) -- the pl.cdiv grid masks the partial boundary block.
    padded = _round_up(n, LANE)
    return LANE, padded // LANE, padded - n


def _choose_tile_rows(rows, lanes, itemsize):
    by_bytes = max(SUBLANE, _TARGET_TILE_BYTES // (lanes * itemsize))
    by_steps = max(SUBLANE, pl.cdiv(rows, _MIN_GRID_STEPS))
    tile_r = min(by_bytes, by_steps, rows)
    if tile_r < rows:
        # Block's second-to-last dim must be a multiple of 8 (or the full dim).
        tile_r = max(SUBLANE, (tile_r // SUBLANE) * SUBLANE)
    else:
        tile_r = rows      # full-dim block is always legal
    return tile_r


def logistic_regression(x, weight, bias):
    """x: [N, 1], weight: [1, 1] f32, bias: [1] f32 -> [N, 1] (x's dtype)."""
    n = x.shape[0]
    dtype = x.dtype
    itemsize = jnp.dtype(dtype).itemsize

    lanes, rows, pad = _choose_layout(n)
    tile_r = _choose_tile_rows(rows, lanes, itemsize)
    grid = (pl.cdiv(rows, tile_r),)

    x_flat = x.reshape(-1)                   # free (contiguous bitcast)
    if pad:
        # Only taken when no candidate lane width divides N (pads < 128 elems);
        # for aligned N the wrapper performs zero extra HBM passes.
        x_flat = jnp.pad(x_flat, (0, pad))
    x_slab = x_flat.reshape(rows, lanes)     # free

    # Parameters stay f32 in SMEM regardless of x's dtype (no sub-32-bit SMEM).
    w_s = weight.reshape(1).astype(jnp.float32)
    b_s = bias.reshape(1).astype(jnp.float32)

    total = rows * lanes
    cost = pl.CostEstimate(
        flops=2 * total,
        transcendentals=total,
        bytes_accessed=2 * total * itemsize,
    )

    y_slab = pl.pallas_call(
        _logreg_kernel,
        out_shape=jax.ShapeDtypeStruct((rows, lanes), dtype),
        grid=grid,
        in_specs=[
            pl.BlockSpec((tile_r, lanes), lambda i: (i, 0)),       # x tile (VMEM, pipelined)
            pl.BlockSpec(memory_space=pltpu.MemorySpace.SMEM),     # weight scalar
            pl.BlockSpec(memory_space=pltpu.MemorySpace.SMEM),     # bias scalar
        ],
        out_specs=pl.BlockSpec((tile_r, lanes), lambda i: (i, 0)),
        compiler_params=pltpu.CompilerParams(
            # Batch axis is embarrassingly parallel -> megacore sharding on v7x.
            dimension_semantics=("parallel",),
            # ~8-9 MiB pipelined VMEM fits every default scoped limit; no
            # vmem_limit_bytes override required.
        ),
        cost_estimate=cost,
        # NOTE: input_output_aliases={0: 0} would drop the second HBM slab,
        # but XLA inserts a defensive copy unless the input is provably dead
        # (donated), so it is intentionally left off here.
    )(x_slab, w_s, b_s)

    y_flat = y_slab.reshape(-1)              # free
    if pad:
        y_flat = y_flat[:n]
    return y_flat.reshape(n, 1)


if __name__ == "__main__":
    key = jax.random.PRNGKey(0)
    kx, kw, kb, kx2, kx3 = jax.random.split(key, 5)

    # Parameters for Linear(1, 1) (uniform(-1, 1) range, deterministic).
    weight = jax.random.uniform(kw, (1, 1), minval=-1.0, maxval=1.0, dtype=jnp.float32)
    bias = jax.random.uniform(kb, (1,), minval=-1.0, maxval=1.0, dtype=jnp.float32)

    # Small batch of scalar features, consistent with Linear(1, 1).
    x = jax.random.normal(kx, (8, 1), dtype=jnp.float32)
    y = logistic_regression(x, weight, bias)
    jax.block_until_ready(y)
    y_ref = jax.nn.sigmoid(x @ weight.T + bias)
    assert y.shape == (8, 1)
    assert jnp.allclose(y, y_ref, atol=1e-5), (y, y_ref)

    # Ragged N (not a multiple of 128): exercises the minimal-pad fallback.
    x2 = jax.random.normal(kx2, (1000, 1), dtype=jnp.float32)
    y2 = logistic_regression(x2, weight, bias)
    jax.block_until_ready(y2)
    assert y2.shape == (1000, 1)
    assert jnp.allclose(y2, jax.nn.sigmoid(x2 @ weight.T + bias), atol=1e-5)

    # Aligned N: zero-copy wrapper path (no pad, no output slice) + wide lanes.
    x3 = jax.random.normal(kx3, (4096, 1), dtype=jnp.float32)
    y3 = logistic_regression(x3, weight, bias)
    jax.block_until_ready(y3)
    assert y3.shape == (4096, 1)
    assert jnp.allclose(y3, jax.nn.sigmoid(x3 @ weight.T + bias), atol=1e-5)

    print("KERNEL_OK")
</pallas_src>

<mosaic_0001>
module attributes {stable_mosaic.version = 11 : i64} {
  func.func @_logreg_kernel(%arg0: i32, %arg1: memref<1x128xf32, #tpu.memory_space<vmem>>, %arg2: memref<1xf32, #tpu.memory_space<smem>>, %arg3: memref<1xf32, #tpu.memory_space<smem>>, %arg4: memref<1x128xf32, #tpu.memory_space<vmem>>) attributes {dimension_semantics = [#tpu.dimension_semantics<parallel>], iteration_bounds = array<i64: 1>, scalar_prefetch = 0 : i64, scratch_operands = 0 : i64, tpu.core_type = #tpu.core_type<tc>, window_params = [{transform_indices = @transform_0, window_bounds = array<i64: 1, 128>}, {transform_indices = @transform_1, window_bounds = array<i64: 1>}, {transform_indices = @transform_2, window_bounds = array<i64: 1>}, {transform_indices = @transform_3, window_bounds = array<i64: 1, 128>}]} {
    %c0 = arith.constant 0 : index
    %0 = memref.load %arg2[%c0] : memref<1xf32, #tpu.memory_space<smem>>
    %c0_0 = arith.constant 0 : index
    %1 = memref.load %arg3[%c0_0] : memref<1xf32, #tpu.memory_space<smem>>
    %c0_1 = arith.constant 0 : index
    %c0_2 = arith.constant 0 : index
    %2 = vector.load %arg1[%c0_1, %c0_2] : memref<1x128xf32, #tpu.memory_space<vmem>>, vector<1x128xf32>
    %3 = vector.broadcast %0 : f32 to vector<1x128xf32>
    %4 = arith.mulf %2, %3 : vector<1x128xf32>
    %5 = vector.broadcast %1 : f32 to vector<1x128xf32>
    %6 = arith.addf %4, %5 : vector<1x128xf32>
    %7 = arith.negf %6 : vector<1x128xf32>
    %8 = math.exp %7 : vector<1x128xf32>
    %cst = arith.constant 1.000000e+00 : f32
    %9 = vector.broadcast %cst : f32 to vector<1x128xf32>
    %10 = arith.addf %9, %8 : vector<1x128xf32>
    %11 = arith.divf %9, %10 : vector<1x128xf32>
    %c0_3 = arith.constant 0 : index
    %c0_4 = arith.constant 0 : index
    %12 = vector.load %arg4[%c0_3, %c0_4] : memref<1x128xf32, #tpu.memory_space<vmem>>, vector<1x128xf32>
    tpu.vector_store %arg4[%c0_3, %c0_4], %11 {strides = array<i32>} : memref<1x128xf32, #tpu.memory_space<vmem>>, vector<1x128xf32>,
    return
  }
  func.func @transform_0(%arg0: i32) -> (i32, i32) {
    %c0_i32 = arith.constant 0 : i32
    %c0_i32_0 = arith.constant 0 : i32
    return %arg0, %c0_i32 : i32, i32
  }
  func.func @transform_1(%arg0: i32) -> i32 {
    %c0_i32 = arith.constant 0 : i32
    %c0_i32_0 = arith.constant 0 : i32
    return %c0_i32 : i32
  }
  func.func @transform_2(%arg0: i32) -> i32 {
    %c0_i32 = arith.constant 0 : i32
    %c0_i32_0 = arith.constant 0 : i32
    return %c0_i32 : i32
  }
  func.func @transform_3(%arg0: i32) -> (i32, i32) {
    %c0_i32 = arith.constant 0 : i32
    %c0_i32_0 = arith.constant 0 : i32
    return %arg0, %c0_i32 : i32, i32
  }
}

</mosaic_0001>

<llo_original>
// kernel: tpu_custom_call.1
$region0: #{tpu_custom_call.1}
  #allocation0 [shape = 'u32[]', space=smem, size = 0x4, offset = 0x4, fixed_abs, tag = 'smem constant byte address 0x4 - core index']
  #allocation1 [shape = 'u32[72,128]{1,0:T(1,128)}', space=vmem, size = 0x9000, scoped, tag = 'internal scratch']
  #allocation2 [shape = 'f32[1]{0:T(128)S(6)}', space=smem, size = 0x200, scoped, tag = 'scoped memory for tpu_custom_call.1']
  #allocation3 [shape = 'f32[1]{0:T(128)S(6)}', space=smem, size = 0x200, scoped, tag = 'scoped memory for tpu_custom_call.1']
  %s0 = inlined_call_operand.vmem [shape: f32[1,128], index: 0, kind: input, shape index: {}]
  %s1 = inlined_call_operand.<no memory space> [shape: f32[1], index: 1, kind: input, shape index: {}]
  %s2 = inlined_call_operand.<no memory space> [shape: f32[1], index: 2, kind: input, shape index: {}]
  %s3 = inlined_call_operand.hbm [shape: f32[1,128], index: 3, kind: output, shape index: {}]
  %s4 = sld [smem:[#allocation0]]
  $region22: #{tpu_custom_call.1} parent=0
    _
  %s6 = ssub.s32 1, %s4
  %s7 = scalar_select 0, %s6, %s4
  %8 = sst [smem:[#allocation2]] %s1
  %9 = sst [smem:[#allocation3]] %s2
  $region1: #{tpu_custom_call.1} parent=0
    #allocation4 [shape = 'u8[512]{0}', space=vmem, size = 0x400, scoped, tag = 'output window, operand 0, single buffered']
    #allocation5 [shape = 's32[1]{0}', space=sflag, size = 0x4, scoped, tag = 'scoped memory for tpu_custom_call.1']
    %10 = vsyncpa [#allocation5], 0
    // Predicated region
    $region2: #{tpu_custom_call.1} parent=1 // pred_check
      _
    $region3: #{tpu_custom_call.1} parent=1 // pred_check_branch
      %12 = sbr.rel (0) target = $region5
    $region4: #{tpu_custom_call.1} parent=1 // pred_region
      _
    $region5: #{tpu_custom_call.1} parent=1 // pred_fallthru
      _
    // Predicated region
    $region6: #{tpu_custom_call.1} parent=1 // pred_check
      _
    $region7: #{tpu_custom_call.1} parent=1 // pred_check_branch
      %14 = sbr.rel (0) target = $region9
    $region8: #{tpu_custom_call.1} parent=1 // pred_region
      _
    $region9: #{tpu_custom_call.1} parent=1 // pred_fallthru
      _
    // Predicated region
    $region10: #{tpu_custom_call.1} parent=1 // pred_check
      _
    $region11: #{tpu_custom_call.1} parent=1 // pred_check_branch
      %16 = sbr.rel (0) target = $region13
    $region12: #{tpu_custom_call.1} parent=1 // pred_region
      _
    $region13: #{tpu_custom_call.1} parent=1 // pred_fallthru
      _
    %s17 = sld [smem:[#allocation2]]
    %s18 = sld [smem:[#allocation3]]
    %v19 = vld [vmem:[%s0] sm:$0x1]
    %v20 = vstv %s17
    %v21 = vmul.f32 %v19, %v20
    %v22 = vstv %s18
    %v23 = vadd.f32 %v21, %v22
    %v24 = vxor.u32 %v23, 2147483648
    %v25 = vmul.f32 %v24, 1.442695
    %v26 = vpow.pop %v25
    %v27 = vadd.f32 %v26, 1.0
    %v28 = vrcp.pop %v27
    %v29 = vmul.f32 %v27, %v28
    %v30 = vsub.f32 1.0, %v29
    %v31 = vmul.f32 %v28, %v30
    %v32 = vadd.f32 %v28, %v31
    %vm33 = vweird.f32 %v27
    %vm34 = vweird.f32 %v28
    %vm35 = vmor %vm33, %vm34
    %v36 = vsel %vm35, %v28, %v32
    %v37 = vand.u32 2147483647, %v27
    %vm38 = vcmp.eq.f32.partialorder %v37, 8.507059e+37
    %v39 = vand.u32 %v27, 2147483648
    %v40 = vor.u32 1.1754944e-38, %v39
    %v41 = vsel %vm38, %v40, %v36
    %v42 = vmul.f32 1.0, %v41
    %43 = vst [vmem:[#allocation4] sm:$0x1] %v42
    // Predicated region
    $region14: #{tpu_custom_call.1} parent=1 // pred_check
      _
    $region15: #{tpu_custom_call.1} parent=1 // pred_check_branch
      %45 = sbr.rel (0) target = $region17
    $region16: #{tpu_custom_call.1} parent=1 // pred_region
      %47 = vsyncadd [#allocation5], 0
      %s49 = sshll.u32 [#allocation4], 4
      %s50 = int_to_ptr.vmem [resolvable:$true] %s49
      %s51 = sshll.u32 %s3, 4
      %s52 = int_to_ptr.hbm [resolvable:$true] %s51
      %54 = dma.vmem_to_hbm [thread:$0]  %s50, 16, %s52, [#allocation5]
    $region17: #{tpu_custom_call.1} parent=1 // pred_fallthru
      _
    // Predicated region
    $region18: #{tpu_custom_call.1} parent=1 // pred_check
      _
    $region19: #{tpu_custom_call.1} parent=1 // pred_check_branch
      %56 = sbr.rel (0) target = $region21
    $region20: #{tpu_custom_call.1} parent=1 // pred_region
      %58 = dma.done [#allocation5], 16
    $region21: #{tpu_custom_call.1} parent=1 // pred_fallthru
      _
    %59 = vsyncpa [#allocation5], 1

</llo_original>
